<compile_context>
chip_gen: v5e
topology: v5e:2x2
jax: 0.10.0
libtpu: 0.0.40
codegen_flags: <defaults>
</compile_context>

<pallas_src>
import functools

import jax
import jax.numpy as jnp
from jax.experimental import pallas as pl
from jax.experimental.pallas import tpu as pltpu


# --------------------------------------------------------------------------- #
# Kernel
# --------------------------------------------------------------------------- #
def _norm_linear_kernel(scalars_ref, x_ref, w_ref, b_ref, out_ref, y_ref, y_acc):
    """One (batch tile i, label tile j) grid step.

    scalars_ref : SMEM (2,)  f32   [scale, shift]                 (scalar prefetch)
    x_ref       : VMEM (tm, Dp)    input tile                     (block index (i, 0))
    w_ref       : VMEM (Dp, tn)    pre-transposed weight slab, compute dtype  ((0, j))
    b_ref       : VMEM (1,  tn)    bias slab, f32                             ((0, j))
    out_ref     : VMEM (tm, tn)    logits tile                                ((i, j))
    y_ref       : VMEM (tm, Dp)    normalized activations (resident over j)   ((i, 0))
    y_acc       : VMEM (tm, Dp)    scratch: y in the MXU compute dtype
    """
    j = pl.program_id(1)

    @pl.when(j == 0)
    def _():
        scale = scalars_ref[0]
        shift = scalars_ref[1]
        y = x_ref[...].astype(jnp.float32) * scale + shift      # single FMA per vreg
        y_ref[...] = y.astype(y_ref.dtype)                       # write y once per i
        y_acc[...] = y.astype(y_acc.dtype)                       # cast once per batch tile

    # (tm, Dp) x (Dp, tn) -> (tm, tn) on the MXU, f32 accumulation.
    logits = jnp.dot(y_acc[...], w_ref[...], preferred_element_type=jnp.float32)
    out_ref[...] = (logits + b_ref[...]).astype(out_ref.dtype)


# --------------------------------------------------------------------------- #
# Tiling helpers
# --------------------------------------------------------------------------- #
def _round_up(v, m):
    return ((v + m - 1) // m) * m


@functools.lru_cache(maxsize=None)
def _vmem_capacity_bytes():
    """Per-core VMEM capacity; conservative 64 MiB fallback (safe on v7x)."""
    try:
        info = pltpu.get_tpu_info()
        for attr in ("vmem_capacity_bytes", "vmem_bytes", "vmem_size_bytes"):
            cap = getattr(info, attr, None)
            if cap:
                return int(cap)
    except Exception:
        pass
    return 64 * 1024 * 1024


def _vmem_need(tm, tn, Dp, xb, cb, ob):
    """Dtype- and double-buffer-accurate VMEM working set of one grid step."""
    return (2 * tm * Dp * xb        # x tile           (pipeline double buffer)
            + 2 * Dp * tn * cb      # weight slab      (streamed, double buffer)
            + 2 * 8 * tn * 4        # bias slab (f32, sublane-padded, double buffer)
            + 2 * tm * tn * ob      # logits tile      (double buffer)
            + 2 * tm * Dp * ob      # y tile           (double buffer)
            + tm * Dp * cb)         # y scratch        (single buffer)


def _choose_tiles(B, Dp, Lp, xb, cb, ob, budget_bytes):
    """Pick (tm, tn) that fits the generation-aware VMEM budget."""
    if B < 8:
        tm = B                       # block == full dim satisfies the (8,128) rule
    else:
        tm = min(1024, _round_up(B, 8))
        # Keep >= ~8 batch tiles (>= 4 pipelined steps per TensorCore on 2-TC parts)
        # once tiles are already >= 256 rows (HBM roofline plateau).
        tm_for_steps = _round_up(-(-B // 8), 8)
        tm = max(8, min(tm, max(256, tm_for_steps)))
        tm = min(tm, _round_up(B, 8))

    tn = min(Lp, 1024)

    while _vmem_need(tm, tn, Dp, xb, cb, ob) > budget_bytes and (tm > 8 or tn > 128):
        # Shrink whichever tile dimension dominates the working set.
        n_cost = tn * (2 * Dp * cb + 2 * tm * ob)
        m_cost = tm * Dp * (2 * xb + 2 * ob + cb)
        if tn > 128 and n_cost >= m_cost:
            tn = max(128, ((tn // 2) // 128) * 128)
        elif tm > 8:
            tm = max(8, ((tm // 2) // 8) * 8)
        else:
            tn = max(128, ((tn // 2) // 128) * 128)
    return tm, tn


# --------------------------------------------------------------------------- #
# Wrapper
# --------------------------------------------------------------------------- #
@functools.partial(jax.jit, static_argnames=("matmul_dtype",))
def custom_output_layer(x, count, weight, bias, matmul_dtype=jnp.bfloat16):
    """x: (B, D), count: scalar, weight: (L, D), bias: (L,).

    Returns (logits (B, L), y (B, D)) — same as the PyTorch module's forward.
    `matmul_dtype` is the MXU compute dtype for the linear layer (bf16 by default;
    pass jnp.float32 for bit-tight logits). y is always computed/stored in f32 math.
    """
    B, D = x.shape
    L = weight.shape[0]
    out_dtype = jnp.promote_types(x.dtype, weight.dtype)
    cdt = jnp.dtype(matmul_dtype)
    xb, cb, ob = x.dtype.itemsize, cdt.itemsize, jnp.dtype(out_dtype).itemsize

    # ---- global min/max -> single affine (scale, shift), computed once ----
    mn = jnp.min(x).astype(jnp.float32)
    mx = jnp.max(x).astype(jnp.float32)
    rng = mx - mn
    rng = jnp.where(rng == 0.0, jnp.float32(1e-8), rng)          # torch: rng[rng==0]=1e-8
    scale = jnp.asarray(count, jnp.float32) / rng                 # traced-safe cast
    shift = -mn * scale
    scalars = jnp.stack([scale, shift])                           # (2,) f32 -> SMEM

    # ---- lane-dense padding of both the feature and the label dims ----
    Dp = _round_up(D, 128)
    Lp = _round_up(L, 128)

    # ---- generation-aware tile selection ----
    cap = _vmem_capacity_bytes()
    budget = int(cap * 0.70)                      # ~45 MiB on v7x, ~90 MiB on v5e/v6e
    tm, tn = _choose_tiles(B, Dp, Lp, xb, cb, ob, budget)

    working = _vmem_need(tm, tn, Dp, xb, cb, ob)
    vmem_limit = max(32 * 1024 * 1024, working + (4 << 20))
    vmem_limit = min(vmem_limit, int(cap * 0.85))                 # leave Mosaic headroom
    vmem_limit = max(vmem_limit, working + (1 << 20))
    vmem_limit = min(vmem_limit, cap)

    # ---- one-time padding / transpose / cast in the wrapper ----
    if Dp != D:
        x_p = jnp.zeros((B, Dp), x.dtype).at[:, :D].set(x)
    else:
        x_p = x
    wt = weight.astype(cdt).T                                     # (D, L), cast + T once
    if (Dp, Lp) != (D, L):
        w_p = jnp.zeros((Dp, Lp), cdt).at[:D, :L].set(wt)
    else:
        w_p = wt
    b_p = jnp.zeros((1, Lp), jnp.float32).at[0, :L].set(bias.astype(jnp.float32))

    m_tiles = pl.cdiv(B, tm)
    n_tiles = pl.cdiv(Lp, tn)

    grid_spec = pltpu.PrefetchScalarGridSpec(
        num_scalar_prefetch=1,
        grid=(m_tiles, n_tiles),
        in_specs=[
            pl.BlockSpec((tm, Dp), lambda i, j, sc: (i, 0)),      # x tile (reused over j)
            pl.BlockSpec((Dp, tn), lambda i, j, sc: (0, j)),      # streamed weight slab
            pl.BlockSpec((1, tn), lambda i, j, sc: (0, j)),       # bias slab
        ],
        out_specs=[
            pl.BlockSpec((tm, tn), lambda i, j, sc: (i, j)),      # logits tile
            pl.BlockSpec((tm, Dp), lambda i, j, sc: (i, 0)),      # y tile (resident over j)
        ],
        scratch_shapes=[pltpu.VMEM((tm, Dp), cdt)],               # y in compute dtype
    )

    out_shapes = (
        jax.ShapeDtypeStruct((B, Lp), out_dtype),
        jax.ShapeDtypeStruct((B, Dp), out_dtype),
    )

    logits_pad, y_pad = pl.pallas_call(
        _norm_linear_kernel,
        out_shape=out_shapes,
        grid_spec=grid_spec,
        compiler_params=pltpu.CompilerParams(
            dimension_semantics=("parallel", "arbitrary"),        # batch tiles across TCs
            vmem_limit_bytes=vmem_limit,
        ),
    )(scalars, x_p, w_p, b_p)

    logits = logits_pad[:, :L] if Lp != L else logits_pad
    y = y_pad[:, :D] if Dp != D else y_pad
    return logits, y


# --------------------------------------------------------------------------- #
# Self-test
# --------------------------------------------------------------------------- #
if __name__ == "__main__":
    key = jax.random.PRNGKey(0)
    k_x, k_w, k_b = jax.random.split(key, 3)

    batch, input_dim, num_labels = 8, 32, 8
    x = jax.random.normal(k_x, (batch, input_dim), dtype=jnp.float32)
    weight = jax.random.uniform(k_w, (num_labels, input_dim), dtype=jnp.float32,
                                minval=-0.1, maxval=0.1)
    bias = jax.random.uniform(k_b, (num_labels,), dtype=jnp.float32,
                              minval=-0.1, maxval=0.1)
    count = 3.0

    # Pure-JAX reference of the exact PyTorch semantics.
    mn, mx = x.min(), x.max()
    rng = mx - mn
    rng = jnp.where(rng == 0.0, 1e-8, rng)
    y_ref = (x - mn) / rng * count
    logits_ref = y_ref @ weight.T + bias

    # f32 MXU path: bit-tight check against the reference.
    logits32, y32 = custom_output_layer(x, count, weight, bias, matmul_dtype=jnp.float32)
    jax.block_until_ready((logits32, y32))
    assert logits32.shape == (batch, num_labels), "logits shape mismatch"
    assert y32.shape == (batch, input_dim), "y shape mismatch"
    assert jnp.allclose(y32, y_ref, atol=1e-5), "y mismatch (f32 path)"
    assert jnp.allclose(logits32, logits_ref, atol=1e-4), "logits mismatch (f32 path)"

    # Default bf16 MXU path (the perf path): y is still exact; logits checked against a
    # bf16-matmul reference built from the kernel's own y, plus a loose sanity check.
    logits_bf, y_bf = custom_output_layer(x, count, weight, bias,
                                          matmul_dtype=jnp.bfloat16)
    jax.block_until_ready((logits_bf, y_bf))
    assert jnp.allclose(y_bf, y_ref, atol=1e-5), "y mismatch (bf16 path)"
    ref_bf = jnp.dot(y_bf.astype(jnp.bfloat16), weight.T.astype(jnp.bfloat16),
                     preferred_element_type=jnp.float32) + bias
    assert jnp.allclose(logits_bf, ref_bf, atol=2e-3), "logits mismatch (bf16 path)"
    assert jnp.allclose(logits_bf, logits_ref, atol=6e-2), "logits far from f32 reference"

    print("KERNEL_OK")
</pallas_src>

<mosaic_0001>
module attributes {stable_mosaic.version = 11 : i64} {
  func.func @_norm_linear_kernel(%arg0: i32, %arg1: i32, %arg2: memref<2xf32, #tpu.memory_space<smem>>, %arg3: memref<8x128xf32, #tpu.memory_space<vmem>>, %arg4: memref<128x128xf32, #tpu.memory_space<vmem>>, %arg5: memref<1x128xf32, #tpu.memory_space<vmem>>, %arg6: memref<8x128xf32, #tpu.memory_space<vmem>>, %arg7: memref<8x128xf32, #tpu.memory_space<vmem>>, %arg8: memref<8x128xf32, #tpu.memory_space<vmem>>) attributes {dimension_semantics = [#tpu.dimension_semantics<parallel>, #tpu.dimension_semantics<arbitrary>], iteration_bounds = array<i64: 1, 1>, scalar_prefetch = 1 : i64, scratch_operands = 1 : i64, tpu.core_type = #tpu.core_type<tc>, window_params = [{transform_indices = @transform_0, window_bounds = array<i64: 8, 128>}, {transform_indices = @transform_1, window_bounds = array<i64: 128, 128>}, {transform_indices = @transform_2, window_bounds = array<i64: 1, 128>}, {transform_indices = @transform_3, window_bounds = array<i64: 8, 128>}, {transform_indices = @transform_4, window_bounds = array<i64: 8, 128>}]} {
    %c0_i32 = arith.constant 0 : i32
    %0 = arith.cmpi eq, %arg1, %c0_i32 : i32
    %1 = arith.extui %0 : i1 to i32
    %c0_i32_0 = arith.constant 0 : i32
    %2 = arith.cmpi ne, %1, %c0_i32_0 : i32
    scf.if %2 {
      %c0_8 = arith.constant 0 : index
      %10 = memref.load %arg2[%c0_8] : memref<2xf32, #tpu.memory_space<smem>>
      %c1 = arith.constant 1 : index
      %11 = memref.load %arg2[%c1] : memref<2xf32, #tpu.memory_space<smem>>
      %c0_9 = arith.constant 0 : index
      %c0_10 = arith.constant 0 : index
      %12 = vector.load %arg3[%c0_9, %c0_10] : memref<8x128xf32, #tpu.memory_space<vmem>>, vector<8x128xf32>
      %13 = vector.broadcast %10 : f32 to vector<8x128xf32>
      %14 = arith.mulf %12, %13 : vector<8x128xf32>
      %15 = vector.broadcast %11 : f32 to vector<8x128xf32>
      %16 = arith.addf %14, %15 : vector<8x128xf32>
      %c0_11 = arith.constant 0 : index
      %c0_12 = arith.constant 0 : index
      %17 = vector.load %arg7[%c0_11, %c0_12] : memref<8x128xf32, #tpu.memory_space<vmem>>, vector<8x128xf32>
      tpu.vector_store %arg7[%c0_11, %c0_12], %16 {strides = array<i32>} : memref<8x128xf32, #tpu.memory_space<vmem>>, vector<8x128xf32>,
      %c0_13 = arith.constant 0 : index
      %c0_14 = arith.constant 0 : index
      %18 = vector.load %arg8[%c0_13, %c0_14] : memref<8x128xf32, #tpu.memory_space<vmem>>, vector<8x128xf32>
      tpu.vector_store %arg8[%c0_13, %c0_14], %16 {strides = array<i32>} : memref<8x128xf32, #tpu.memory_space<vmem>>, vector<8x128xf32>,
    } else {
    }
    %c0 = arith.constant 0 : index
    %c0_1 = arith.constant 0 : index
    %3 = vector.load %arg8[%c0, %c0_1] : memref<8x128xf32, #tpu.memory_space<vmem>>, vector<8x128xf32>
    %c0_2 = arith.constant 0 : index
    %c0_3 = arith.constant 0 : index
    %4 = vector.load %arg4[%c0_2, %c0_3] : memref<128x128xf32, #tpu.memory_space<vmem>>, vector<128x128xf32>
    %cst = arith.constant dense<0.000000e+00> : vector<8x128xf32>
    %5 = tpu.matmul %3, %4, %cst {dimension_numbers = #tpu.dot_dimension_numbers<[1], [0], [0], [1], [0, 0, 1, 1], [], []>} : vector<8x128xf32>, vector<128x128xf32>, vector<8x128xf32> -> vector<8x128xf32>
    %c0_4 = arith.constant 0 : index
    %c0_5 = arith.constant 0 : index
    %6 = vector.load %arg5[%c0_4, %c0_5] : memref<1x128xf32, #tpu.memory_space<vmem>>, vector<1x128xf32>
    %7 = vector.broadcast %6 : vector<1x128xf32> to vector<8x128xf32>
    %8 = arith.addf %5, %7 : vector<8x128xf32>
    %c0_6 = arith.constant 0 : index
    %c0_7 = arith.constant 0 : index
    %9 = vector.load %arg6[%c0_6, %c0_7] : memref<8x128xf32, #tpu.memory_space<vmem>>, vector<8x128xf32>
    tpu.vector_store %arg6[%c0_6, %c0_7], %8 {strides = array<i32>} : memref<8x128xf32, #tpu.memory_space<vmem>>, vector<8x128xf32>,
    return
  }
  func.func @transform_0(%arg0: i32, %arg1: i32, %arg2: memref<2xf32, #tpu.memory_space<smem>>) -> (i32, i32) {
    %c0_i32 = arith.constant 0 : i32
    %c0_i32_0 = arith.constant 0 : i32
    return %arg0, %c0_i32 : i32, i32
  }
  func.func @transform_1(%arg0: i32, %arg1: i32, %arg2: memref<2xf32, #tpu.memory_space<smem>>) -> (i32, i32) {
    %c0_i32 = arith.constant 0 : i32
    %c0_i32_0 = arith.constant 0 : i32
    return %c0_i32, %arg1 : i32, i32
  }
  func.func @transform_2(%arg0: i32, %arg1: i32, %arg2: memref<2xf32, #tpu.memory_space<smem>>) -> (i32, i32) {
    %c0_i32 = arith.constant 0 : i32
    %c0_i32_0 = arith.constant 0 : i32
    return %c0_i32, %arg1 : i32, i32
  }
  func.func @transform_3(%arg0: i32, %arg1: i32, %arg2: memref<2xf32, #tpu.memory_space<smem>>) -> (i32, i32) {
    %c0_i32 = arith.constant 0 : i32
    return %arg0, %arg1 : i32, i32
  }
  func.func @transform_4(%arg0: i32, %arg1: i32, %arg2: memref<2xf32, #tpu.memory_space<smem>>) -> (i32, i32) {
    %c0_i32 = arith.constant 0 : i32
    %c0_i32_0 = arith.constant 0 : i32
    return %arg0, %c0_i32 : i32, i32
  }
}

</mosaic_0001>

<llo_original>
// kernel: custom_output_layer.1
$region0: #{custom_output_layer.1}
  #allocation0 [shape = 'u32[]', space=smem, size = 0x4, offset = 0x4, fixed_abs, tag = 'smem constant byte address 0x4 - core index']
  #allocation1 [shape = 'u32[72,128]{1,0:T(1,128)}', space=vmem, size = 0x9000, scoped, tag = 'internal scratch']
  #allocation2 [shape = 'f32[8,128]{1,0:T(8,128)}', space=vmem, size = 0x1000, scoped, tag = 'scratch operand']
  #allocation3 [shape = 's32[1]{0}', space=sflag, size = 0x4, scoped, tag = 'scoped memory for custom_output_layer.1']
  #allocation4 [shape = 'u8[512]{0}', space=smem, size = 0x200, scoped, tag = 'prefetched SMEM operand 0']
  %s0 = inlined_call_operand.vmem [shape: f32[2], index: 0, kind: input, shape index: {}]
  %s1 = inlined_call_operand.vmem [shape: f32[8,128], index: 1, kind: input, shape index: {}]
  %s2 = inlined_call_operand.vmem [shape: f32[128,128], index: 2, kind: input, shape index: {}]
  %s3 = inlined_call_operand.vmem [shape: f32[1,128], index: 3, kind: input, shape index: {}]
  %s4 = inlined_call_operand.hbm [shape: f32[8,128], index: 4, kind: output, shape index: {0}]
  %s5 = inlined_call_operand.hbm [shape: f32[8,128], index: 5, kind: output, shape index: {1}]
  %6 = xla_tuple %s4, %s5
  %s7 = sld [smem:[#allocation0]]
  $region34: #{custom_output_layer.1} parent=0
    _
  %s9 = ssub.s32 1, %s7
  %s10 = scalar_select 0, %s9, %s7
  %s12 = sshll.u32 %s0, 4
  %s13 = int_to_ptr.vmem [resolvable:$true] %s12
  %15 = dma.vmem_to_smem %s13, 16, [#allocation4], [#allocation3]
  %17 = dma.done [#allocation3], 16
  %18 = sfence
  $region1: #{custom_output_layer.1} parent=0
    #allocation5 [shape = 'u8[4096]{0}', space=vmem, size = 0x1000, scoped, tag = 'output window, operand 0, single buffered']
    #allocation6 [shape = 's32[1]{0}', space=sflag, size = 0x4, scoped, tag = 'scoped memory for custom_output_layer.1']
    #allocation7 [shape = 'u8[4096]{0}', space=vmem, size = 0x1000, scoped, tag = 'output window, operand 1, single buffered']
    #allocation8 [shape = 's32[1]{0}', space=sflag, size = 0x4, scoped, tag = 'scoped memory for custom_output_layer.1']
    %19 = vsyncpa [#allocation6], 0
    %20 = vsyncpa [#allocation8], 0
    // Predicated region
    $region2: #{custom_output_layer.1} parent=1 // pred_check
      _
    $region3: #{custom_output_layer.1} parent=1 // pred_check_branch
      %22 = sbr.rel (0) target = $region5
    $region4: #{custom_output_layer.1} parent=1 // pred_region
      _
    $region5: #{custom_output_layer.1} parent=1 // pred_fallthru
      _
    // Predicated region
    $region6: #{custom_output_layer.1} parent=1 // pred_check
      _
    $region7: #{custom_output_layer.1} parent=1 // pred_check_branch
      %24 = sbr.rel (0) target = $region9
    $region8: #{custom_output_layer.1} parent=1 // pred_region
      _
    $region9: #{custom_output_layer.1} parent=1 // pred_fallthru
      _
    // Predicated region
    $region10: #{custom_output_layer.1} parent=1 // pred_check
      _
    $region11: #{custom_output_layer.1} parent=1 // pred_check_branch
      %26 = sbr.rel (0) target = $region13
    $region12: #{custom_output_layer.1} parent=1 // pred_region
      _
    $region13: #{custom_output_layer.1} parent=1 // pred_fallthru
      _
    %p27 = scmp.eq.s32.totalorder 0, 0
    // Predicated region
    $region14: #{custom_output_layer.1} parent=1 // pred_check
      %p28 = pneg %p27
    $region15: #{custom_output_layer.1} parent=1 // pred_check_branch
      %30 = sbr.rel (%p28) target = $region17
    $region16: #{custom_output_layer.1} parent=1 // pred_region
      %s31 = sld [smem:[#allocation4]]
      %s32 = sld [smem:[#allocation4 + $0x1]]
      %v33 = vld [vmem:[%s1] sm:$0xff]
      %v34 = vstv %s31
      %v35 = vmul.f32 %v33, %v34
      %v36 = vstv %s32
      %v37 = vadd.f32 %v35, %v36
      %38 = vst [vmem:[#allocation7] sm:$0xff] %v37
      %39 = vst [vmem:[#allocation2] sm:$0xff] %v37
    $region17: #{custom_output_layer.1} parent=1 // pred_fallthru
      _
    %v40 = vld [vmem:[#allocation2] sm:$0xff]
    %v41 = vld [vmem:[%s2] sm:$0xff]
    %v42 = vld [vmem:[%s2 + $0x8] sm:$0xff]
    %v43 = vld [vmem:[%s2 + $0x10] sm:$0xff]
    %v44 = vld [vmem:[%s2 + $0x18] sm:$0xff]
    %v45 = vld [vmem:[%s2 + $0x20] sm:$0xff]
    %v46 = vld [vmem:[%s2 + $0x28] sm:$0xff]
    %v47 = vld [vmem:[%s2 + $0x30] sm:$0xff]
    %v48 = vld [vmem:[%s2 + $0x38] sm:$0xff]
    %v49 = vld [vmem:[%s2 + $0x40] sm:$0xff]
    %v50 = vld [vmem:[%s2 + $0x48] sm:$0xff]
    %v51 = vld [vmem:[%s2 + $0x50] sm:$0xff]
    %v52 = vld [vmem:[%s2 + $0x58] sm:$0xff]
    %v53 = vld [vmem:[%s2 + $0x60] sm:$0xff]
    %v54 = vld [vmem:[%s2 + $0x68] sm:$0xff]
    %v55 = vld [vmem:[%s2 + $0x70] sm:$0xff]
    %v56 = vld [vmem:[%s2 + $0x78] sm:$0xff]
    %v57 = vld [vmem:[%s3] sm:$0x1]
    %v59 = vperm.slane %v57, 0
    %61 = vmatpush.msra.mxu0 %v56
    %62 = vmatpush.msra.mxu0 %v55
    %63 = vmatpush.msra.mxu0 %v54
    %64 = vmatpush.msra.mxu0 %v53
    %65 = vmatpush.msra.mxu0 %v52
    %66 = vmatpush.msra.mxu0 %v51
    %67 = vmatpush.msra.mxu0 %v50
    %68 = vmatpush.msra.mxu0 %v49
    %69 = vmatpush.msra.mxu0 %v48
    %70 = vmatpush.msra.mxu0 %v47
    %71 = vmatpush.msra.mxu0 %v46
    %72 = vmatpush.msra.mxu0 %v45
    %73 = vmatpush.msra.mxu0 %v44
    %74 = vmatpush.msra.mxu0 %v43
    %75 = vmatpush.msra.mxu0 %v42
    %76 = vmatpush.msra.mxu0 %v41
    %77 = vmatmul.f32.gmra.mxu0 %v40
    %v78 = vpop.f32.mrf.mxu0
    %v79 = vadd.f32 %v59, %v78
    %80 = vdwg.mxu0
    %81 = vst [vmem:[#allocation5] sm:$0xff] %v79
    // Predicated region
    $region18: #{custom_output_layer.1} parent=1 // pred_check
      _
    $region19: #{custom_output_layer.1} parent=1 // pred_check_branch
      %83 = sbr.rel (0) target = $region21
    $region20: #{custom_output_layer.1} parent=1 // pred_region
      %85 = vsyncadd [#allocation6], 0
      %s87 = sshll.u32 [#allocation5], 4
      %s88 = int_to_ptr.vmem [resolvable:$true] %s87
      %s89 = sshll.u32 %s4, 4
      %s90 = int_to_ptr.hbm [resolvable:$true] %s89
      %92 = dma.vmem_to_hbm [thread:$0]  %s88, 128, %s90, [#allocation6]
    $region21: #{custom_output_layer.1} parent=1 // pred_fallthru
      _
    // Predicated region
    $region22: #{custom_output_layer.1} parent=1 // pred_check
      _
    $region23: #{custom_output_layer.1} parent=1 // pred_check_branch
      %94 = sbr.rel (0) target = $region25
    $region24: #{custom_output_layer.1} parent=1 // pred_region
      %96 = vsyncadd [#allocation8], 0
      %s98 = sshll.u32 [#allocation7], 4
      %s99 = int_to_ptr.vmem [resolvable:$true] %s98
      %s100 = sshll.u32 %s5, 4
      %s101 = int_to_ptr.hbm [resolvable:$true] %s100
      %103 = dma.vmem_to_hbm [thread:$0]  %s99, 128, %s101, [#allocation8]
    $region25: #{custom_output_layer.1} parent=1 // pred_fallthru
      _
    // Predicated region
    $region26: #{custom_output_layer.1} parent=1 // pred_check
      _
    $region27: #{custom_output_layer.1} parent=1 // pred_check_branch
      %105 = sbr.rel (0) target = $region29
    $region28: #{custom_output_layer.1} parent=1 // pred_region
      %107 = dma.done [#allocation6], 128
    $region29: #{custom_output_layer.1} parent=1 // pred_fallthru
      _
    // Predicated region
    $region30: #{custom_output_layer.1} parent=1 // pred_check
      _
    $region31: #{custom_output_layer.1} parent=1 // pred_check_branch
      %109 = sbr.rel (0) target = $region33
    $region32: #{custom_output_layer.1} parent=1 // pred_region
      %111 = dma.done [#allocation8], 128
    $region33: #{custom_output_layer.1} parent=1 // pred_fallthru
      _
    %112 = vsyncpa [#allocation6], 1
    %113 = vsyncpa [#allocation8], 1

</llo_original>
